<compile_context>
chip_gen: v6e
topology: v6e:2x2x1
jax: 0.10.0
libtpu: 0.0.40
codegen_flags: <defaults>
</compile_context>

<pallas_src>
import functools
import math

import jax
import jax.numpy as jnp
from jax.experimental import pallas as pl
from jax.experimental.pallas import tpu as pltpu

EPS = 1e-12  # F.normalize default eps


def _act_tri_net_kernel(x_ref, o_ref, *, act):
    # x_ref / o_ref: (B, C, TL) lane-dense blocks; channel axis is axis 1.
    v = act(x_ref[...].astype(jnp.float32))                # activation, f32 accumulate
    ssq = jnp.sum(v * v, axis=1, keepdims=True)            # (B, 1, TL), short VPU add chain
    inv = jax.lax.rsqrt(jnp.maximum(ssq, EPS * EPS))       # == 1/max(||x||, eps), on the EUP
    o_ref[...] = (v * inv).astype(o_ref.dtype)


def _largest_tile(L, C, itemsize, max_block_bytes, min_steps):
    """Largest multiple-of-128 divisor of L whose (1, C, tl) block stays under
    max_block_bytes and leaves at least `min_steps` grid steps along L.
    Returns None if L has no multiple-of-128 divisor in range."""
    max_elems = max(128, max_block_bytes // (C * itemsize))
    if min_steps > 1:
        max_elems = min(max_elems, max(128, L // min_steps))
    best = None
    t = 128
    limit = min(L, max_elems)
    while t <= limit:
        if L % t == 0:
            best = t
        t += 128
    return best


def act_tri_net_forward(x, act_dim, act=None, *, max_block_bytes=4 << 20,
                        small_input_bytes=2 << 20):
    """x: (N, C, H, W).  Returns act(x[..., :act_dim]) L2-normalized over C (dim=1)."""
    if act is None:
        act = lambda v: jnp.maximum(v, 0.0)      # nn.ReLU default
    N, C, H, W = x.shape
    assert 0 < act_dim <= W
    itemsize = jnp.dtype(x.dtype).itemsize

    # 1) Column slice: free (fused) when act_dim == W; otherwise one XLA slice so the
    #    kernel sees a lane-dense slab (dense stores/DMAs are worth far more than the
    #    extra slice pass for narrow act_dim).
    xs = x if act_dim == W else x[:, :, :, :act_dim]

    # 2) Flatten (H, act_dim) -> L.  Free reshape (contiguous).
    L = H * act_dim
    pad = 0
    if L % 128 != 0 and C * L * itemsize > 2 * max_block_bytes:
        pad = (-L) % 128                          # zero-pad so L tiles by 128-multiples
    xf = xs.reshape(N, C, L)
    if pad:
        xf = jnp.pad(xf, ((0, 0), (0, 0), (0, pad)))
    Lp = L + pad

    kernel = functools.partial(_act_tri_net_kernel, act=act)
    total_bytes = N * C * Lp * itemsize

    if total_bytes <= small_input_bytes:
        # Small-input fast path: everything in one block / one grid step.
        grid = (1,)
        in_spec = pl.BlockSpec((N, C, Lp), lambda i: (0, 0, 0))
        out_spec = pl.BlockSpec((N, C, Lp), lambda i: (0, 0, 0))
        semantics = ("arbitrary",)
        block_bytes = total_bytes
    else:
        min_steps = max(1, math.ceil(8 / N))      # >= ~8 total steps for v7x megacore
        tl = _largest_tile(Lp, C, itemsize, max_block_bytes, min_steps)
        if tl is None:
            tl = Lp                               # Lp % 128 != 0 but small: one block per n
        grid = (N, Lp // tl)
        in_spec = pl.BlockSpec((1, C, tl), lambda n, l: (n, 0, l))
        out_spec = pl.BlockSpec((1, C, tl), lambda n, l: (n, 0, l))
        semantics = ("parallel", "parallel")
        block_bytes = C * tl * itemsize

    # 2 x (in + out) double-buffered blocks = 4 x block_bytes; give headroom but stay
    # under v7x's 64 MiB physical VMEM.
    vmem_limit = min(48 << 20, max(32 << 20, 5 * block_bytes))

    cost = pl.CostEstimate(
        flops=4 * N * C * Lp,
        transcendentals=N * Lp,
        bytes_accessed=2 * N * C * Lp * itemsize,
    )

    out_flat = pl.pallas_call(
        kernel,
        out_shape=jax.ShapeDtypeStruct((N, C, Lp), x.dtype),
        grid_spec=pltpu.PrefetchScalarGridSpec(
            num_scalar_prefetch=0,
            grid=grid,
            in_specs=[in_spec],
            out_specs=out_spec,
        ),
        compiler_params=pltpu.CompilerParams(
            dimension_semantics=semantics,
            vmem_limit_bytes=vmem_limit,
        ),
        cost_estimate=cost,
    )(xf)

    if pad:
        out_flat = out_flat[:, :, :L]
    return out_flat.reshape(N, C, H, act_dim)


def _reference(x, act_dim):
    # Pure-JAX reference matching PyTorch exactly: relu -> x / clamp_min(||x||_2, eps).
    v = jnp.maximum(x[:, :, :, :act_dim], 0.0)
    denom = jnp.maximum(jnp.sqrt(jnp.sum(v * v, axis=1, keepdims=True)), EPS)
    return v / denom


if __name__ == "__main__":
    key = jax.random.PRNGKey(0)
    N, C, H, W = 2, 4, 16, 16
    act_dim = 8

    x = jax.random.normal(key, (N, C, H, W), dtype=jnp.float32)

    out = act_tri_net_forward(x, act_dim)
    out = jax.block_until_ready(out)

    ref = _reference(x, act_dim)
    assert out.shape == (N, C, H, act_dim)
    assert jnp.allclose(out, ref, atol=1e-5, rtol=1e-5), float(jnp.max(jnp.abs(out - ref)))

    print("KERNEL_OK")
</pallas_src>

<mosaic_0001>
module attributes {stable_mosaic.version = 11 : i64} {
  func.func @_act_tri_net_kernel(%arg0: i32, %arg1: memref<2x4x128xf32, #tpu.memory_space<vmem>>, %arg2: memref<2x4x128xf32, #tpu.memory_space<vmem>>) attributes {dimension_semantics = [#tpu.dimension_semantics<arbitrary>], iteration_bounds = array<i64: 1>, scalar_prefetch = 0 : i64, scratch_operands = 0 : i64, tpu.core_type = #tpu.core_type<tc>, window_params = [{pipeline_mode = #tpu.pipeline_mode<synchronous>, transform_indices = @transform_0, window_bounds = array<i64: 2, 4, 128>}, {pipeline_mode = #tpu.pipeline_mode<synchronous>, transform_indices = @transform_1, window_bounds = array<i64: 2, 4, 128>}]} {
    %c0 = arith.constant 0 : index
    %c0_0 = arith.constant 0 : index
    %c0_1 = arith.constant 0 : index
    %0 = vector.load %arg1[%c0, %c0_0, %c0_1] : memref<2x4x128xf32, #tpu.memory_space<vmem>>, vector<2x4x128xf32>
    %cst = arith.constant 0.000000e+00 : f32
    %1 = vector.broadcast %cst : f32 to vector<2x4x128xf32>
    %2 = arith.maximumf %0, %1 : vector<2x4x128xf32>
    %3 = arith.mulf %2, %2 : vector<2x4x128xf32>
    %cst_2 = arith.constant dense<0.000000e+00> : vector<2x128xf32>
    %4 = vector.multi_reduction <add>, %3, %cst_2 [1] : vector<2x4x128xf32> to vector<2x128xf32>
    %5 = vector.shape_cast %4 : vector<2x128xf32> to vector<2x1x128xf32>
    %cst_3 = arith.constant 1.000000e-24 : f32
    %6 = vector.broadcast %cst_3 : f32 to vector<2x1x128xf32>
    %7 = arith.maximumf %5, %6 : vector<2x1x128xf32>
    %8 = math.rsqrt %7 : vector<2x1x128xf32>
    %9 = vector.broadcast %8 : vector<2x1x128xf32> to vector<2x4x128xf32>
    %10 = arith.mulf %2, %9 : vector<2x4x128xf32>
    %c0_4 = arith.constant 0 : index
    %c0_5 = arith.constant 0 : index
    %c0_6 = arith.constant 0 : index
    %11 = vector.load %arg2[%c0_4, %c0_5, %c0_6] : memref<2x4x128xf32, #tpu.memory_space<vmem>>, vector<2x4x128xf32>
    tpu.vector_store %arg2[%c0_4, %c0_5, %c0_6], %10 {strides = array<i32>} : memref<2x4x128xf32, #tpu.memory_space<vmem>>, vector<2x4x128xf32>,
    return
  }
  func.func @transform_0(%arg0: i32) -> (i32, i32, i32) {
    %c0_i32 = arith.constant 0 : i32
    %c0_i32_0 = arith.constant 0 : i32
    %c0_i32_1 = arith.constant 0 : i32
    %c0_i32_2 = arith.constant 0 : i32
    return %c0_i32, %c0_i32_0, %c0_i32_1 : i32, i32, i32
  }
  func.func @transform_1(%arg0: i32) -> (i32, i32, i32) {
    %c0_i32 = arith.constant 0 : i32
    %c0_i32_0 = arith.constant 0 : i32
    %c0_i32_1 = arith.constant 0 : i32
    %c0_i32_2 = arith.constant 0 : i32
    return %c0_i32, %c0_i32_0, %c0_i32_1 : i32, i32, i32
  }
}

</mosaic_0001>

<llo_original>
// kernel: tpu_custom_call.1
$region0: #{tpu_custom_call.1}
  #allocation0 [shape = 'u32[]', space=smem, size = 0x4, offset = 0x4, fixed_abs, tag = 'smem constant byte address 0x4 - core index']
  #allocation1 [shape = 'u32[144,128]{1,0:T(1,128)}', space=vmem, size = 0x12000, scoped, tag = 'internal scratch']
  %s0 = inlined_call_operand.hbm [shape: f32[2,4,128], index: 0, kind: input, shape index: {}]
  %s1 = inlined_call_operand.hbm [shape: f32[2,4,128], index: 1, kind: output, shape index: {}]
  %s2 = sld [smem:[#allocation0]]
  $region18: #{tpu_custom_call.1} parent=0
    _
  %s4 = ssub.s32 1, %s2
  %s5 = scalar_select 0, %s4, %s2
  $region1: #{tpu_custom_call.1} parent=0
    #allocation2 [shape = 'u8[4096]{0}', space=vmem, size = 0x1000, scoped, tag = 'input window, operand 0, single buffered']
    #allocation3 [shape = 's32[1]{0}', space=sflag, size = 0x4, scoped, tag = 'scoped memory for tpu_custom_call.1']
    #allocation4 [shape = 's32[1]{0}', space=sflag, size = 0x4, scoped, tag = 'scoped memory for tpu_custom_call.1']
    #allocation5 [shape = 'u8[4096]{0}', space=vmem, size = 0x1000, scoped, tag = 'output window, operand 0, single buffered']
    %6 = vsyncpa [#allocation3], 0
    %7 = vsyncpa [#allocation4], 0
    // Predicated region
    $region2: #{tpu_custom_call.1} parent=1 // pred_check
      _
    $region3: #{tpu_custom_call.1} parent=1 // pred_check_branch
      %9 = sbr.rel (0) target = $region5
    $region4: #{tpu_custom_call.1} parent=1 // pred_region
      %s11 = ssub.s32 128, 128
      %12 = vsyncadd [#allocation3], %s11
      %s13 = sshll.u32 [#allocation2], 4
      %s14 = int_to_ptr.vmem [resolvable:$true] %s13
      %19 = dma.hbm_to_vmem [thread:$0]  %s0, 128, %s14, [#allocation3], 64, 64, 4
    $region5: #{tpu_custom_call.1} parent=1 // pred_fallthru
      _
    // Predicated region
    $region6: #{tpu_custom_call.1} parent=1 // pred_check
      _
    $region7: #{tpu_custom_call.1} parent=1 // pred_check_branch
      %21 = sbr.rel (0) target = $region9
    $region8: #{tpu_custom_call.1} parent=1 // pred_region
      %22 = dma.done [#allocation3], 128
    $region9: #{tpu_custom_call.1} parent=1 // pred_fallthru
      _
    %v23 = vld [vmem:[#allocation2] sm:$0xf]
    %v24 = vld [vmem:[#allocation2 + $0x4] sm:$0xf]
    %v25 = vmax.f32 %v23, 0.0
    %v26 = vmax.f32 %v24, 0.0
    %v27 = vmul.f32 %v25, %v25
    %v28 = vmul.f32 %v26, %v26
    %vm29 = vcmask 1043456
    %v30 = vsel %vm29, %v27, 0.0
    %v31 = vrot.slane %v30, 4
    %v32 = vadd.f32 %v30, %v31
    %v33 = vrot.slane %v32, 2
    %v34 = vadd.f32 %v32, %v33
    %v35 = vrot.slane %v34, 1
    %v36 = vadd.f32 %v34, %v35
    %v37 = vsel %vm29, %v28, 0.0
    %v38 = vrot.slane %v37, 4
    %v39 = vadd.f32 %v37, %v38
    %v40 = vrot.slane %v39, 2
    %v41 = vadd.f32 %v39, %v40
    %v42 = vrot.slane %v41, 1
    %v43 = vadd.f32 %v41, %v42
    %v44 = vmax.f32 %v36, 1e-24
    %v45 = vmax.f32 %v43, 1e-24
    %v46 = vrsqrt.pop %v44
    %v47 = vrsqrt.pop %v45
    %v48 = vmul.f32 %v25, %v46
    %v49 = vmul.f32 %v26, %v47
    %50 = vst [vmem:[#allocation5] sm:$0xf] %v48
    %51 = vst [vmem:[#allocation5 + $0x4] sm:$0xf] %v49
    // Predicated region
    $region10: #{tpu_custom_call.1} parent=1 // pred_check
      _
    $region11: #{tpu_custom_call.1} parent=1 // pred_check_branch
      %53 = sbr.rel (0) target = $region13
    $region12: #{tpu_custom_call.1} parent=1 // pred_region
      %s55 = ssub.s32 128, 128
      %56 = vsyncadd [#allocation4], %s55
      %s57 = sshll.u32 [#allocation5], 4
      %s58 = int_to_ptr.vmem [resolvable:$true] %s57
      %63 = dma.vmem_to_hbm [thread:$0]  %s58, 128, %s1, [#allocation4], 64, 64, 4
    $region13: #{tpu_custom_call.1} parent=1 // pred_fallthru
      _
    // Predicated region
    $region14: #{tpu_custom_call.1} parent=1 // pred_check
      _
    $region15: #{tpu_custom_call.1} parent=1 // pred_check_branch
      %65 = sbr.rel (0) target = $region17
    $region16: #{tpu_custom_call.1} parent=1 // pred_region
      %66 = dma.done [#allocation4], 128
    $region17: #{tpu_custom_call.1} parent=1 // pred_fallthru
      _
    %67 = vsyncpa [#allocation3], 1
    %68 = vsyncpa [#allocation4], 1

</llo_original>
